<compile_context>
chip_gen: v7x
topology: tpu7x:2x2x1
jax: 0.10.0
libtpu: 0.0.40
codegen_flags: <defaults>
</compile_context>

<pallas_src>
import jax
import jax.numpy as jnp
from jax.experimental import pallas as pl
from jax.experimental.pallas import tpu as pltpu


def simple_nn_kernel(w_ref, b_ref, x_ref, o_ref):
    # w_ref: SMEM (2,), b_ref: SMEM (1,)
    # x_ref: VMEM (2, S, 128), o_ref: VMEM (S, 128)
    x0 = x_ref[0]                                   # (S, 128) slab
    x1 = x_ref[1]                                   # (S, 128) slab
    y = x0 * w_ref[0] + x1 * w_ref[1] + b_ref[0]    # VPU FMAs, scalar operands from SMEM
    # LeakyReLU, PyTorch default negative_slope = 0.01
    o_ref[...] = jnp.where(y > 0.0, y, 0.01 * y).astype(o_ref.dtype)


def simple_nn_forward(x, w1, b1, w2, b2, *, block_rows=2048):
    """x: (B, 2); w1: (3, 2); b1: (3,); w2: (1, 3); b2: (1,).  Returns (B, 1) f32."""
    B = x.shape[0]

    # --- fold the two linears into one affine map (mathematically exact) ---
    w_eff = (w2 @ w1).reshape(2).astype(jnp.float32)          # (2,)
    b_eff = (w2 @ b1 + b2).reshape(1).astype(jnp.float32)     # (1,)

    # --- lane+sublane dense layout: batch -> (R, 128); pad only to a multiple of 128 ---
    b128 = pl.cdiv(B, 128) * 128
    R = b128 // 128
    xt = jnp.pad(x.astype(jnp.float32).T, ((0, 0), (0, b128 - B))).reshape(2, R, 128)

    # --- block sizing: big blocks to amortize per-step overhead; grid >= 2 for v7x ---
    if R <= 16:
        S = R                                       # single full-extent block
    else:
        S = min(block_rows, pl.cdiv(R, 2))          # at least 2 grid steps (megacore)
        S = max(8, (S // 8) * 8)                    # sublane multiple of 8
    grid = (pl.cdiv(R, S),)

    out = pl.pallas_call(
        simple_nn_kernel,
        out_shape=jax.ShapeDtypeStruct((R, 128), jnp.float32),
        grid=grid,
        in_specs=[
            pl.BlockSpec(memory_space=pltpu.MemorySpace.SMEM),   # w_eff (2,)
            pl.BlockSpec(memory_space=pltpu.MemorySpace.SMEM),   # b_eff (1,)
            pl.BlockSpec((2, S, 128), lambda i: (0, i, 0)),      # x tile (2, S, 128)
        ],
        out_specs=pl.BlockSpec((S, 128), lambda i: (i, 0)),      # dense (S, 128) output
        compiler_params=pltpu.CompilerParams(
            dimension_semantics=("parallel",),                   # megacore on v7x
            vmem_limit_bytes=32 * 1024 * 1024,                   # ample for 2x(2+1) MiB bufs
        ),
    )(w_eff, b_eff, xt)

    return out.reshape(b128)[:B].reshape(B, 1)


def init_params(key):
    """Deterministic init mimicking nn.Linear's uniform(-1/sqrt(fan_in), +1/sqrt(fan_in))."""
    k1, k2, k3, k4 = jax.random.split(key, 4)
    bound1 = 1.0 / jnp.sqrt(2.0)   # fan_in = 2
    bound2 = 1.0 / jnp.sqrt(3.0)   # fan_in = 3
    w1 = jax.random.uniform(k1, (3, 2), jnp.float32, -bound1, bound1)
    b1 = jax.random.uniform(k2, (3,), jnp.float32, -bound1, bound1)
    w2 = jax.random.uniform(k3, (1, 3), jnp.float32, -bound2, bound2)
    b2 = jax.random.uniform(k4, (1,), jnp.float32, -bound2, bound2)
    return w1, b1, w2, b2


def _reference(x, w1, b1, w2, b2):
    # Pure-JAX reference of the ORIGINAL (unfolded) module.
    h = x @ w1.T + b1
    y = h @ w2.T + b2
    return jnp.where(y > 0, y, 0.01 * y)


if __name__ == "__main__":
    key = jax.random.PRNGKey(0)
    k_x, k_x2, k_p = jax.random.split(key, 3)
    w1, b1, w2, b2 = init_params(k_p)

    # Small case (single block, R = 1).
    B = 8
    x = jax.random.normal(k_x, (B, 2), jnp.float32)
    out = simple_nn_forward(x, w1, b1, w2, b2)
    jax.block_until_ready(out)
    ref = _reference(x, w1, b1, w2, b2)
    assert out.shape == (B, 1)
    assert jnp.allclose(out, ref, atol=1e-5, rtol=1e-5)

    # Slightly larger case exercising the tiled multi-block path (R = 32, grid = 2).
    B2 = 4096
    x2 = jax.random.normal(k_x2, (B2, 2), jnp.float32)
    out2 = simple_nn_forward(x2, w1, b1, w2, b2)
    jax.block_until_ready(out2)
    ref2 = _reference(x2, w1, b1, w2, b2)
    assert out2.shape == (B2, 1)
    assert jnp.allclose(out2, ref2, atol=1e-5, rtol=1e-5)

    print("KERNEL_OK")
</pallas_src>

<mosaic_0001>
module attributes {stable_mosaic.version = 11 : i64} {
  func.func @simple_nn_kernel(%arg0: i32, %arg1: memref<2xf32, #tpu.memory_space<smem>>, %arg2: memref<1xf32, #tpu.memory_space<smem>>, %arg3: memref<2x1x128xf32, #tpu.memory_space<vmem>>, %arg4: memref<1x128xf32, #tpu.memory_space<vmem>>) attributes {dimension_semantics = [#tpu.dimension_semantics<parallel>], iteration_bounds = array<i64: 1>, scalar_prefetch = 0 : i64, scratch_operands = 0 : i64, tpu.core_type = #tpu.core_type<tc>, window_params = [{transform_indices = @transform_0, window_bounds = array<i64: 2>}, {transform_indices = @transform_1, window_bounds = array<i64: 1>}, {transform_indices = @transform_2, window_bounds = array<i64: 2, 1, 128>}, {transform_indices = @transform_3, window_bounds = array<i64: 1, 128>}]} {
    %c0 = arith.constant 0 : index
    %c0_0 = arith.constant 0 : index
    %c0_1 = arith.constant 0 : index
    %0 = vector.load %arg3[%c0, %c0_0, %c0_1] : memref<2x1x128xf32, #tpu.memory_space<vmem>>, vector<1x1x128xf32>
    %1 = vector.shape_cast %0 : vector<1x1x128xf32> to vector<1x128xf32>
    %c1 = arith.constant 1 : index
    %c0_2 = arith.constant 0 : index
    %c0_3 = arith.constant 0 : index
    %2 = vector.load %arg3[%c1, %c0_2, %c0_3] : memref<2x1x128xf32, #tpu.memory_space<vmem>>, vector<1x1x128xf32>
    %3 = vector.shape_cast %2 : vector<1x1x128xf32> to vector<1x128xf32>
    %c0_4 = arith.constant 0 : index
    %4 = memref.load %arg1[%c0_4] : memref<2xf32, #tpu.memory_space<smem>>
    %5 = vector.broadcast %4 : f32 to vector<1x128xf32>
    %6 = arith.mulf %1, %5 : vector<1x128xf32>
    %c1_5 = arith.constant 1 : index
    %7 = memref.load %arg1[%c1_5] : memref<2xf32, #tpu.memory_space<smem>>
    %8 = vector.broadcast %7 : f32 to vector<1x128xf32>
    %9 = arith.mulf %3, %8 : vector<1x128xf32>
    %10 = arith.addf %6, %9 : vector<1x128xf32>
    %c0_6 = arith.constant 0 : index
    %11 = memref.load %arg2[%c0_6] : memref<1xf32, #tpu.memory_space<smem>>
    %12 = vector.broadcast %11 : f32 to vector<1x128xf32>
    %13 = arith.addf %10, %12 : vector<1x128xf32>
    %cst = arith.constant 0.000000e+00 : f32
    %14 = vector.broadcast %cst : f32 to vector<1x128xf32>
    %15 = arith.cmpf ogt, %13, %14 : vector<1x128xf32>
    %cst_7 = arith.constant 0.00999999977 : f32
    %16 = vector.broadcast %cst_7 : f32 to vector<1x128xf32>
    %17 = arith.mulf %16, %13 : vector<1x128xf32>
    %18 = arith.select %15, %13, %17 : vector<1x128xi1>, vector<1x128xf32>
    %c0_8 = arith.constant 0 : index
    %c0_9 = arith.constant 0 : index
    %19 = vector.load %arg4[%c0_8, %c0_9] : memref<1x128xf32, #tpu.memory_space<vmem>>, vector<1x128xf32>
    tpu.vector_store %arg4[%c0_8, %c0_9], %18 {strides = array<i32>} : memref<1x128xf32, #tpu.memory_space<vmem>>, vector<1x128xf32>,
    return
  }
  func.func @transform_0(%arg0: i32) -> i32 {
    %c0_i32 = arith.constant 0 : i32
    %c0_i32_0 = arith.constant 0 : i32
    return %c0_i32 : i32
  }
  func.func @transform_1(%arg0: i32) -> i32 {
    %c0_i32 = arith.constant 0 : i32
    %c0_i32_0 = arith.constant 0 : i32
    return %c0_i32 : i32
  }
  func.func @transform_2(%arg0: i32) -> (i32, i32, i32) {
    %c0_i32 = arith.constant 0 : i32
    %c0_i32_0 = arith.constant 0 : i32
    %c0_i32_1 = arith.constant 0 : i32
    return %c0_i32, %arg0, %c0_i32_0 : i32, i32, i32
  }
  func.func @transform_3(%arg0: i32) -> (i32, i32) {
    %c0_i32 = arith.constant 0 : i32
    %c0_i32_0 = arith.constant 0 : i32
    return %arg0, %c0_i32 : i32, i32
  }
}

</mosaic_0001>

<llo_original>
// kernel: tpu_custom_call.1
$region0: #{tpu_custom_call.1}
  #allocation0 [shape = 'u32[]', space=smem, size = 0x4, offset = 0x4, fixed_abs, tag = 'smem constant byte address 0x4 - core index']
  #allocation1 [shape = 'u32[144,128]{1,0:T(1,128)}', space=vmem, size = 0x12000, scoped, tag = 'internal scratch']
  #allocation2 [shape = 'f32[1]{0:T(128)S(6)}', space=smem, size = 0x200, scoped, tag = 'scoped memory for tpu_custom_call.1']
  %s0 = inlined_call_operand.vmem [shape: f32[2], index: 0, kind: input, shape index: {}]
  %s1 = inlined_call_operand.<no memory space> [shape: f32[1], index: 1, kind: input, shape index: {}]
  %s2 = inlined_call_operand.vmem [shape: f32[2,1,128], index: 2, kind: input, shape index: {}]
  %s3 = inlined_call_operand.hbm [shape: f32[1,128], index: 3, kind: output, shape index: {}]
  %s4 = sld [smem:[#allocation0]]
  $region26: #{tpu_custom_call.1} parent=0
    _
  %s6 = ssub.s32 1, %s4
  %s7 = scalar_select 0, %s6, %s4
  %8 = sst [smem:[#allocation2]] %s1
  $region1: #{tpu_custom_call.1} parent=0
    #allocation3 [shape = 'u8[512]{0}', space=smem, size = 0x200, scoped, tag = 'input window, operand 0, single buffered']
    #allocation4 [shape = 's32[1]{0}', space=sflag, size = 0x4, scoped, tag = 'scoped memory for tpu_custom_call.1']
    #allocation5 [shape = 's32[1]{0}', space=sflag, size = 0x4, scoped, tag = 'scoped memory for tpu_custom_call.1']
    #allocation6 [shape = 'u8[512]{0}', space=vmem, size = 0x400, scoped, tag = 'output window, operand 0, single buffered']
    %9 = vsyncpa [#allocation5], 0
    %10 = vsyncpa [#allocation4], 0
    // Predicated region
    $region2: #{tpu_custom_call.1} parent=1 // pred_check
      _
    $region3: #{tpu_custom_call.1} parent=1 // pred_check_branch
      %12 = sbr.rel (0) target = $region5
    $region4: #{tpu_custom_call.1} parent=1 // pred_region
      %s14 = ssub.s32 16, 16
      %15 = vsyncadd [#allocation5], %s14
      %s17 = sshll.u32 %s0, 4
      %s18 = int_to_ptr.vmem [resolvable:$true] %s17
      %20 = dma.vmem_to_smem %s18, 16, [#allocation3], [#allocation5]
    $region5: #{tpu_custom_call.1} parent=1 // pred_fallthru
      _
    // Predicated region
    $region6: #{tpu_custom_call.1} parent=1 // pred_check
      _
    $region7: #{tpu_custom_call.1} parent=1 // pred_check_branch
      %22 = sbr.rel (0) target = $region9
    $region8: #{tpu_custom_call.1} parent=1 // pred_region
      _
    $region9: #{tpu_custom_call.1} parent=1 // pred_fallthru
      _
    // Predicated region
    $region10: #{tpu_custom_call.1} parent=1 // pred_check
      _
    $region11: #{tpu_custom_call.1} parent=1 // pred_check_branch
      %24 = sbr.rel (0) target = $region13
    $region12: #{tpu_custom_call.1} parent=1 // pred_region
      _
    $region13: #{tpu_custom_call.1} parent=1 // pred_fallthru
      _
    // Predicated region
    $region14: #{tpu_custom_call.1} parent=1 // pred_check
      _
    $region15: #{tpu_custom_call.1} parent=1 // pred_check_branch
      %26 = sbr.rel (0) target = $region17
    $region16: #{tpu_custom_call.1} parent=1 // pred_region
      %27 = dma.done [#allocation5], 16
    $region17: #{tpu_custom_call.1} parent=1 // pred_fallthru
      _
    %28 = sfence
    %v29 = vld [vmem:[%s2] sm:$0x1]
    %s30 = scalar_lea.vmem %s2, 1
    %v31 = vld [vmem:[%s30] sm:$0x1]
    %s32 = sld [smem:[#allocation3]]
    %v33 = vstv %s32
    %v34 = vmul.f32 %v29, %v33
    %s35 = sld [smem:[#allocation3 + $0x1]]
    %v36 = vstv %s35
    %v37 = vmul.f32 %v31, %v36
    %v38 = vadd.f32 %v34, %v37
    %s39 = sld [smem:[#allocation2]]
    %v40 = vstv %s39
    %v41 = vadd.f32 %v38, %v40
    %vm42 = vcmp.gt.f32.partialorder %v41, 0.0
    %v43 = vmul.f32 %v41, 0.01
    %v44 = vsel %vm42, %v41, %v43
    %45 = vst [vmem:[#allocation6] sm:$0x1] %v44
    // Predicated region
    $region18: #{tpu_custom_call.1} parent=1 // pred_check
      _
    $region19: #{tpu_custom_call.1} parent=1 // pred_check_branch
      %47 = sbr.rel (0) target = $region21
    $region20: #{tpu_custom_call.1} parent=1 // pred_region
      %s49 = ssub.s32 16, 16
      %50 = vsyncadd [#allocation4], %s49
      %s52 = sshll.u32 [#allocation6], 4
      %s53 = int_to_ptr.vmem [resolvable:$true] %s52
      %55 = dma.vmem_to_hbm [thread:$0]  %s53, 16, %s3, [#allocation4]
    $region21: #{tpu_custom_call.1} parent=1 // pred_fallthru
      _
    // Predicated region
    $region22: #{tpu_custom_call.1} parent=1 // pred_check
      _
    $region23: #{tpu_custom_call.1} parent=1 // pred_check_branch
      %57 = sbr.rel (0) target = $region25
    $region24: #{tpu_custom_call.1} parent=1 // pred_region
      %58 = dma.done [#allocation4], 16
    $region25: #{tpu_custom_call.1} parent=1 // pred_fallthru
      _
    %59 = vsyncpa [#allocation4], 1
    %60 = vsyncpa [#allocation5], 1

</llo_original>
